<compile_context>
chip_gen: v7x
topology: tpu7x:2x2x1
jax: 0.10.0
libtpu: 0.0.40
codegen_flags: <defaults>
</compile_context>

<pallas_src>
import functools

import jax
import jax.numpy as jnp
from jax.experimental import pallas as pl
from jax.experimental.pallas import tpu as pltpu


def _round_up(n, m):
    return ((n + m - 1) // m) * m


def _cdiv(a, b):
    return -(-a // b)


# --------------------------------------------------------------------------------------
# Kernels
# --------------------------------------------------------------------------------------
def _resident_kernel(x_ref, w1_ref, w2_ref, shifts_ref, o_ref):
    """Both folded (dpad, dpad) bf16 weights resident in VMEM; grid = (batch tiles,)."""
    xin = x_ref[...]
    # Linear1 + BatchNorm1 (folded): bf16 MXU matmul, f32 accumulation.
    h = jnp.dot(xin.astype(jnp.bfloat16), w1_ref[...],
                preferred_element_type=jnp.float32) + shifts_ref[0:1, :]
    h = jnp.maximum(h, 0.2 * h)          # LeakyReLU(0.2); Dropout = identity in eval mode
    # Linear2 + BatchNorm2 (folded).
    h = jnp.dot(h.astype(jnp.bfloat16), w2_ref[...],
                preferred_element_type=jnp.float32) + shifts_ref[1:2, :]
    # Residual add.
    o_ref[...] = (xin.astype(jnp.float32) + h).astype(o_ref.dtype)


def _streamed_kernel(x_ref, w1n_ref, w2n_ref, s1n_ref, s2_ref, o_ref, acc_ref):
    """Weight-streaming path; grid = (batch tiles, dpad // tn).

    Step n computes the full h[:, n*tn:(n+1)*tn] slab (complete K reduction against the
    streamed W1 column slab), applies shift+LeakyReLU, and immediately consumes it against
    the streamed W2 row slab, accumulating into the f32 scratch.  No resident weights.
    """
    n = pl.program_id(1)
    xin = x_ref[...]                                        # resident per batch tile

    @pl.when(n == 0)
    def _():
        acc_ref[...] = xin.astype(jnp.float32) + s2_ref[...]    # residual + layer-2 shift

    h = jnp.dot(xin.astype(jnp.bfloat16), w1n_ref[...],
                preferred_element_type=jnp.float32) + s1n_ref[...]
    h = jnp.maximum(h, 0.2 * h)                              # LeakyReLU(0.2); Dropout = identity
    acc_ref[...] += jnp.dot(h.astype(jnp.bfloat16), w2n_ref[...],
                            preferred_element_type=jnp.float32)

    @pl.when(n == pl.num_programs(1) - 1)
    def _():
        o_ref[...] = acc_ref[...].astype(o_ref.dtype)


# --------------------------------------------------------------------------------------
# Capability / hardware probes
# --------------------------------------------------------------------------------------
def _probe_copy_kernel(x_ref, o_ref):
    o_ref[...] = x_ref[...]


@functools.lru_cache(maxsize=None)
def _single_buffer_supported():
    """Tiny isolated probe: can grid-invariant operands use pipeline_mode=pl.Buffered(1)?

    A failure here only disables the single-buffering optimization; the real kernel call is
    never wrapped in an exception handler, so genuine VMEM-OOM / lowering errors surface.
    """
    if not hasattr(pl, "Buffered"):
        return False
    try:
        fn = pl.pallas_call(
            _probe_copy_kernel,
            out_shape=jax.ShapeDtypeStruct((8, 128), jnp.float32),
            grid=(1,),
            in_specs=[pl.BlockSpec((8, 128), lambda i: (0, 0),
                                   pipeline_mode=pl.Buffered(1))],
            out_specs=pl.BlockSpec((8, 128), lambda i: (0, 0)),
        )
        jax.block_until_ready(fn(jnp.zeros((8, 128), jnp.float32)))
        return True
    except Exception:
        return False


def _vmem_capacity_bytes():
    try:
        return int(pltpu.get_tpu_info().vmem_capacity_bytes)
    except Exception:
        return 128 * 1024 * 1024          # conservative default (v5e/v6e); v7x reports 64 MiB


# --------------------------------------------------------------------------------------
# Wrapper
# --------------------------------------------------------------------------------------
def residual_block(x, folded, *, block_batch=256, block_n=512, io_dtype=None,
                   force_stream=False):
    """Eval-mode ResidualBlock forward.  x: (B, dim) float32.  folded: fold_params() output."""
    B, dim = x.shape
    dpad = folded["dpad"]
    assert folded["dim"] == dim

    io_dtype = x.dtype if io_dtype is None else jnp.dtype(io_dtype)
    io_bytes = jnp.dtype(io_dtype).itemsize

    vmem_budget = int(0.85 * _vmem_capacity_bytes())
    single_buf = _single_buffer_supported()
    slack = 2 << 20

    # ---- batch tiling -----------------------------------------------------------------
    # bm ~= round_up(ceil(B/steps), 8): bounds padding waste; >=2 steps whenever possible so
    # the "parallel" batch axis can be sharded across v7x's 2 TensorCores.
    min_steps = 2 if B >= 16 else 1
    steps = max(_cdiv(B, max(block_batch, 8)), min_steps)
    bm0 = max(8, _round_up(_cdiv(B, steps), 8))

    w_buf_factor = 1 if single_buf else 2

    def resident_need(bm_):
        return (2 * dpad * dpad * 2 * w_buf_factor      # folded bf16 weights (resident)
                + 4 * bm_ * dpad * io_bytes             # x + out tiles, double-buffered
                + 2 * 2 * dpad * 4                      # packed shifts
                + slack)

    def stream_need(bm_, tn_):
        return (8 * dpad * tn_                          # 2 bf16 weight slabs, double-buffered
                + 4 * bm_ * dpad * io_bytes             # x + out tiles, double-buffered
                + 4 * bm_ * dpad                        # f32 output accumulator scratch
                + 4 * 4 * dpad                          # shift operands
                + slack)

    # ---- choose resident-weight vs weight-streaming path -------------------------------
    bm = bm0
    use_stream = bool(force_stream)
    if not use_stream:
        for cand in sorted({bm0, min(bm0, 256), min(bm0, 128)}, reverse=True):
            if resident_need(cand) <= vmem_budget:
                bm = cand
                break
        else:
            use_stream = True           # e.g. large dim on v7x: weights can't stay resident
            bm = bm0

    tn = 0
    if use_stream:
        tn = max(128, (min(block_n, dpad) // 128) * 128)
        while dpad % tn:
            tn -= 128
        while stream_need(bm, tn) > vmem_budget and tn > 128:
            tn -= 128
            while tn > 128 and dpad % tn:
                tn -= 128
        while stream_need(bm, tn) > vmem_budget and bm > 8:
            bm = max(8, _round_up(bm // 2, 8))

    grid0 = _cdiv(B, bm)
    Bp = grid0 * bm

    xp = x
    if (Bp, dpad) != (B, dim):
        xp = jnp.pad(x, ((0, Bp - B), (0, dpad - dim)))
    if xp.dtype != io_dtype:
        xp = xp.astype(io_dtype)

    need = stream_need(bm, tn) if use_stream else resident_need(bm)
    vmem_limit = min(vmem_budget, max(int(need * 1.25), 32 << 20))

    flops = 4 * Bp * dpad * dpad        # two (bm, d) x (d, d) matmuls per row
    w_bytes = (folded["w1"].size + folded["w2"].size) * 2
    bytes_accessed = int(xp.size * io_bytes + Bp * dpad * io_bytes
                         + (grid0 if use_stream else 1) * w_bytes
                         + folded["shifts"].size * 4)
    cost = pl.CostEstimate(flops=flops, transcendentals=0, bytes_accessed=bytes_accessed)

    if not use_stream:
        def const_spec(shape):
            idx = lambda i: (0,) * len(shape)
            if single_buf:
                # Grid-invariant operand: single-buffer it (no dead second VMEM copy).
                return pl.BlockSpec(shape, idx, pipeline_mode=pl.Buffered(1))
            return pl.BlockSpec(shape, idx)

        out = pl.pallas_call(
            _resident_kernel,
            out_shape=jax.ShapeDtypeStruct((Bp, dpad), io_dtype),
            grid_spec=pltpu.PrefetchScalarGridSpec(
                num_scalar_prefetch=0,
                grid=(grid0,),
                in_specs=[
                    pl.BlockSpec((bm, dpad), lambda i: (i, 0)),   # x tile, streamed over batch
                    const_spec((dpad, dpad)),                     # folded W1 (bf16), resident
                    const_spec((dpad, dpad)),                     # folded W2 (bf16), resident
                    const_spec((2, dpad)),                        # packed per-feature shifts
                ],
                out_specs=pl.BlockSpec((bm, dpad), lambda i: (i, 0)),
            ),
            compiler_params=pltpu.CompilerParams(
                dimension_semantics=("parallel",),
                vmem_limit_bytes=vmem_limit,
            ),
            cost_estimate=cost,
        )(xp, folded["w1"], folded["w2"], folded["shifts"])
    else:
        nn = dpad // tn
        s1 = folded["shifts"][0:1, :]
        s2 = folded["shifts"][1:2, :]
        out = pl.pallas_call(
            _streamed_kernel,
            out_shape=jax.ShapeDtypeStruct((Bp, dpad), io_dtype),
            grid_spec=pltpu.PrefetchScalarGridSpec(
                num_scalar_prefetch=0,
                grid=(grid0, nn),
                in_specs=[
                    pl.BlockSpec((bm, dpad), lambda i, n: (i, 0)),   # x tile (resident per i)
                    pl.BlockSpec((dpad, tn), lambda i, n: (0, n)),   # W1 column slab (streamed)
                    pl.BlockSpec((tn, dpad), lambda i, n: (n, 0)),   # W2 row slab (streamed)
                    pl.BlockSpec((1, tn),   lambda i, n: (0, n)),    # layer-1 shift slab
                    pl.BlockSpec((1, dpad), lambda i, n: (0, 0)),    # layer-2 shift (resident)
                ],
                out_specs=pl.BlockSpec((bm, dpad), lambda i, n: (i, 0)),
                scratch_shapes=[pltpu.VMEM((bm, dpad), jnp.float32)],
            ),
            compiler_params=pltpu.CompilerParams(
                dimension_semantics=("parallel", "arbitrary"),
                vmem_limit_bytes=vmem_limit,
            ),
            cost_estimate=cost,
        )(xp, folded["w1"], folded["w2"], s1, s2)

    return out[:B, :dim]


# --------------------------------------------------------------------------------------
# Parameter construction / folding (host side)
# --------------------------------------------------------------------------------------
def make_params(key, dim):
    """Deterministic synthetic parameters matching the PyTorch module shapes (eval-mode stats)."""
    ks = jax.random.split(key, 12)
    return {
        "w1": jax.random.normal(ks[0], (dim, dim), jnp.float32) * 0.05,
        "b1": jax.random.normal(ks[1], (dim,), jnp.float32) * 0.05,
        "w2": jax.random.normal(ks[2], (dim, dim), jnp.float32) * 0.05,
        "b2": jax.random.normal(ks[3], (dim,), jnp.float32) * 0.05,
        "g1": 1.0 + 0.1 * jax.random.normal(ks[4], (dim,), jnp.float32),
        "beta1": 0.1 * jax.random.normal(ks[5], (dim,), jnp.float32),
        "rm1": 0.1 * jax.random.normal(ks[6], (dim,), jnp.float32),
        "rv1": 1.0 + 0.1 * jax.random.uniform(ks[7], (dim,), jnp.float32),
        "g2": 1.0 + 0.1 * jax.random.normal(ks[8], (dim,), jnp.float32),
        "beta2": 0.1 * jax.random.normal(ks[9], (dim,), jnp.float32),
        "rm2": 0.1 * jax.random.normal(ks[10], (dim,), jnp.float32),
        "rv2": 1.0 + 0.1 * jax.random.uniform(ks[11], (dim,), jnp.float32),
    }


def fold_params(p, dim, eps=1e-5, pad_to=128):
    """Fold Linear bias + eval-mode BatchNorm into the weights/shifts, pad to lane-dense dim,
    and cast weights to bf16 for the MXU."""
    dpad = _round_up(dim, pad_to)

    s1 = p["g1"] / jnp.sqrt(p["rv1"] + eps)
    s2 = p["g2"] / jnp.sqrt(p["rv2"] + eps)
    shift1 = s1 * (p["b1"] - p["rm1"]) + p["beta1"]
    shift2 = s2 * (p["b2"] - p["rm2"]) + p["beta2"]

    # (in, out) layout with the BN scale folded into each output column.
    w1f = p["w1"].T * s1[None, :]
    w2f = p["w2"].T * s2[None, :]

    pad2 = lambda a: jnp.pad(a, ((0, dpad - dim), (0, dpad - dim)))
    w1f = pad2(w1f).astype(jnp.bfloat16)
    w2f = pad2(w2f).astype(jnp.bfloat16)

    shifts = jnp.stack([shift1, shift2], axis=0)
    shifts = jnp.pad(shifts, ((0, 0), (0, dpad - dim))).astype(jnp.float32)

    return {"w1": w1f, "w2": w2f, "shifts": shifts, "dim": dim, "dpad": dpad}


# --------------------------------------------------------------------------------------
# Pure-JAX references
# --------------------------------------------------------------------------------------
def residual_block_ref_folded(x, folded):
    """Same folded bf16-matmul / f32-accumulate path as the kernels (kernel correctness)."""
    B, dim = x.shape
    dpad = folded["dpad"]
    xp = jnp.pad(x, ((0, 0), (0, dpad - dim)))
    h = jnp.dot(xp.astype(jnp.bfloat16), folded["w1"],
                preferred_element_type=jnp.float32) + folded["shifts"][0][None, :]
    h = jnp.maximum(h, 0.2 * h)
    h = jnp.dot(h.astype(jnp.bfloat16), folded["w2"],
                preferred_element_type=jnp.float32) + folded["shifts"][1][None, :]
    return (xp + h)[:, :dim]


def residual_block_ref_f32(x, p, eps=1e-5):
    """Unfolded full-f32 eval-mode math (validates the folding; loose tol vs bf16 weights)."""
    h = x @ p["w1"].T + p["b1"]
    h = (h - p["rm1"]) / jnp.sqrt(p["rv1"] + eps) * p["g1"] + p["beta1"]
    h = jnp.where(h > 0, h, 0.2 * h)
    h = h @ p["w2"].T + p["b2"]
    h = (h - p["rm2"]) / jnp.sqrt(p["rv2"] + eps) * p["g2"] + p["beta2"]
    return x + h


# --------------------------------------------------------------------------------------
# Self-test
# --------------------------------------------------------------------------------------
if __name__ == "__main__":
    key = jax.random.PRNGKey(0)
    kx, kp, kx2, kp2 = jax.random.split(key, 4)

    # Config 1: resident-weight path; exercises feature padding (96 -> 128) and a 2-step
    # batch grid (bm = 192, so both v7x TensorCores would get a tile).
    B1, d1 = 384, 96
    x1 = jax.random.normal(kx, (B1, d1), jnp.float32)
    p1 = make_params(kp, d1)
    f1 = fold_params(p1, d1)

    out1 = jax.block_until_ready(residual_block(x1, f1, block_batch=256))
    assert out1.shape == (B1, d1)
    ref1 = residual_block_ref_folded(x1, f1)
    assert float(jnp.max(jnp.abs(out1 - ref1))) < 5e-3, float(jnp.max(jnp.abs(out1 - ref1)))
    reff1 = residual_block_ref_f32(x1, p1)
    assert float(jnp.max(jnp.abs(out1 - reff1))) < 5e-2, float(jnp.max(jnp.abs(out1 - reff1)))

    # Config 2: force the weight-streaming path (multi-slab: dpad=384 -> 3 slabs of 128,
    # 2 batch tiles of 104 rows) to validate the large-dim / v7x code path at small shapes.
    B2, d2 = 200, 320
    x2 = jax.random.normal(kx2, (B2, d2), jnp.float32)
    p2 = make_params(kp2, d2)
    f2 = fold_params(p2, d2)

    out2 = jax.block_until_ready(
        residual_block(x2, f2, block_batch=128, block_n=128, force_stream=True))
    assert out2.shape == (B2, d2)
    ref2 = residual_block_ref_folded(x2, f2)
    assert float(jnp.max(jnp.abs(out2 - ref2))) < 5e-3, float(jnp.max(jnp.abs(out2 - ref2)))

    # Config 3: optional bf16 I/O streaming (HBM-bound regime); loose tol for bf16 x/out.
    out3 = jax.block_until_ready(
        residual_block(x1, f1, block_batch=256, io_dtype=jnp.bfloat16))
    ref3 = residual_block_ref_folded(x1.astype(jnp.bfloat16).astype(jnp.float32), f1)
    err3 = float(jnp.max(jnp.abs(out3.astype(jnp.float32) - ref3)))
    assert err3 < 6e-2, err3

    print("KERNEL_OK")
</pallas_src>

<mosaic_0001>
module attributes {stable_mosaic.version = 11 : i64} {
  func.func @_probe_copy_kernel(%arg0: i32, %arg1: memref<8x128xf32, #tpu.memory_space<vmem>>, %arg2: memref<8x128xf32, #tpu.memory_space<vmem>>) attributes {dimension_semantics = [#tpu.dimension_semantics<arbitrary>], iteration_bounds = array<i64: 1>, scalar_prefetch = 0 : i64, scratch_operands = 0 : i64, tpu.core_type = #tpu.core_type<tc>, window_params = [{pipeline_mode = #tpu.pipeline_mode<synchronous>, transform_indices = @transform_0, window_bounds = array<i64: 8, 128>}, {pipeline_mode = #tpu.pipeline_mode<synchronous>, transform_indices = @transform_1, window_bounds = array<i64: 8, 128>}]} {
    %c0 = arith.constant 0 : index
    %c0_0 = arith.constant 0 : index
    %0 = vector.load %arg1[%c0, %c0_0] : memref<8x128xf32, #tpu.memory_space<vmem>>, vector<8x128xf32>
    %c0_1 = arith.constant 0 : index
    %c0_2 = arith.constant 0 : index
    %1 = vector.load %arg2[%c0_1, %c0_2] : memref<8x128xf32, #tpu.memory_space<vmem>>, vector<8x128xf32>
    tpu.vector_store %arg2[%c0_1, %c0_2], %0 {strides = array<i32>} : memref<8x128xf32, #tpu.memory_space<vmem>>, vector<8x128xf32>,
    return
  }
  func.func @transform_0(%arg0: i32) -> (i32, i32) {
    %c0_i32 = arith.constant 0 : i32
    %c0_i32_0 = arith.constant 0 : i32
    %c0_i32_1 = arith.constant 0 : i32
    return %c0_i32, %c0_i32_0 : i32, i32
  }
  func.func @transform_1(%arg0: i32) -> (i32, i32) {
    %c0_i32 = arith.constant 0 : i32
    %c0_i32_0 = arith.constant 0 : i32
    %c0_i32_1 = arith.constant 0 : i32
    return %c0_i32, %c0_i32_0 : i32, i32
  }
}

module attributes {stable_mosaic.version = 11 : i64} {
  func.func @_resident_kernel(%arg0: i32, %arg1: memref<192x128xf32, #tpu.memory_space<vmem>>, %arg2: memref<128x128xbf16, #tpu.memory_space<vmem>>, %arg3: memref<128x128xbf16, #tpu.memory_space<vmem>>, %arg4: memref<2x128xf32, #tpu.memory_space<vmem>>, %arg5: memref<192x128xf32, #tpu.memory_space<vmem>>) attributes {dimension_semantics = [#tpu.dimension_semantics<parallel>], iteration_bounds = array<i64: 2>, scalar_prefetch = 0 : i64, scratch_operands = 0 : i64, tpu.core_type = #tpu.core_type<tc>, window_params = [{transform_indices = @transform_0, window_bounds = array<i64: 192, 128>}, {pipeline_mode = #tpu.pipeline_mode<synchronous>, transform_indices = @transform_1, window_bounds = array<i64: 128, 128>}, {pipeline_mode = #tpu.pipeline_mode<synchronous>, transform_indices = @transform_2, window_bounds = array<i64: 128, 128>}, {pipeline_mode = #tpu.pipeline_mode<synchronous>, transform_indices = @transform_3, window_bounds = array<i64: 2, 128>}, {transform_indices = @transform_4, window_bounds = array<i64: 192, 128>}]} {
    %c0 = arith.constant 0 : index
    %c0_0 = arith.constant 0 : index
    %0 = vector.load %arg1[%c0, %c0_0] : memref<192x128xf32, #tpu.memory_space<vmem>>, vector<192x128xf32>
    %1 = arith.truncf %0 : vector<192x128xf32> to vector<192x128xbf16>
    %c0_1 = arith.constant 0 : index
    %c0_2 = arith.constant 0 : index
    %2 = vector.load %arg2[%c0_1, %c0_2] : memref<128x128xbf16, #tpu.memory_space<vmem>>, vector<128x128xbf16>
    %cst = arith.constant dense<0.000000e+00> : vector<192x128xf32>
    %3 = tpu.matmul %1, %2, %cst {dimension_numbers = #tpu.dot_dimension_numbers<[1], [0], [0], [1], [0, 0, 1, 1], [], []>} : vector<192x128xbf16>, vector<128x128xbf16>, vector<192x128xf32> -> vector<192x128xf32>
    %c0_3 = arith.constant 0 : index
    %c0_4 = arith.constant 0 : index
    %4 = vector.load %arg4[%c0_3, %c0_4] : memref<2x128xf32, #tpu.memory_space<vmem>>, vector<1x128xf32>
    %5 = vector.broadcast %4 : vector<1x128xf32> to vector<192x128xf32>
    %6 = arith.addf %3, %5 : vector<192x128xf32>
    %cst_5 = arith.constant 2.000000e-01 : f32
    %7 = vector.broadcast %cst_5 : f32 to vector<192x128xf32>
    %8 = arith.mulf %7, %6 : vector<192x128xf32>
    %9 = arith.maximumf %6, %8 : vector<192x128xf32>
    %10 = arith.truncf %9 : vector<192x128xf32> to vector<192x128xbf16>
    %c0_6 = arith.constant 0 : index
    %c0_7 = arith.constant 0 : index
    %11 = vector.load %arg3[%c0_6, %c0_7] : memref<128x128xbf16, #tpu.memory_space<vmem>>, vector<128x128xbf16>
    %cst_8 = arith.constant dense<0.000000e+00> : vector<192x128xf32>
    %12 = tpu.matmul %10, %11, %cst_8 {dimension_numbers = #tpu.dot_dimension_numbers<[1], [0], [0], [1], [0, 0, 1, 1], [], []>} : vector<192x128xbf16>, vector<128x128xbf16>, vector<192x128xf32> -> vector<192x128xf32>
    %c1 = arith.constant 1 : index
    %c0_9 = arith.constant 0 : index
    %13 = vector.load %arg4[%c1, %c0_9] : memref<2x128xf32, #tpu.memory_space<vmem>>, vector<1x128xf32>
    %14 = vector.broadcast %13 : vector<1x128xf32> to vector<192x128xf32>
    %15 = arith.addf %12, %14 : vector<192x128xf32>
    %16 = arith.addf %0, %15 : vector<192x128xf32>
    %c0_10 = arith.constant 0 : index
    %c0_11 = arith.constant 0 : index
    %17 = vector.load %arg5[%c0_10, %c0_11] : memref<192x128xf32, #tpu.memory_space<vmem>>, vector<192x128xf32>
    tpu.vector_store %arg5[%c0_10, %c0_11], %16 {strides = array<i32>} : memref<192x128xf32, #tpu.memory_space<vmem>>, vector<192x128xf32>,
    return
  }
  func.func @transform_0(%arg0: i32) -> (i32, i32) {
    %c0_i32 = arith.constant 0 : i32
    %c0_i32_0 = arith.constant 0 : i32
    return %arg0, %c0_i32 : i32, i32
  }
  func.func @transform_1(%arg0: i32) -> (i32, i32) {
    %c0_i32 = arith.constant 0 : i32
    %c0_i32_0 = arith.constant 0 : i32
    %c0_i32_1 = arith.constant 0 : i32
    return %c0_i32, %c0_i32_0 : i32, i32
  }
  func.func @transform_2(%arg0: i32) -> (i32, i32) {
    %c0_i32 = arith.constant 0 : i32
    %c0_i32_0 = arith.constant 0 : i32
    %c0_i32_1 = arith.constant 0 : i32
    return %c0_i32, %c0_i32_0 : i32, i32
  }
  func.func @transform_3(%arg0: i32) -> (i32, i32) {
    %c0_i32 = arith.constant 0 : i32
    %c0_i32_0 = arith.constant 0 : i32
    %c0_i32_1 = arith.constant 0 : i32
    return %c0_i32, %c0_i32_0 : i32, i32
  }
  func.func @transform_4(%arg0: i32) -> (i32, i32) {
    %c0_i32 = arith.constant 0 : i32
    %c0_i32_0 = arith.constant 0 : i32
    return %arg0, %c0_i32 : i32, i32
  }
}

</mosaic_0001>

<llo_original>
// kernel: tpu_custom_call.1
$region0: #{tpu_custom_call.1}
  #allocation0 [shape = 'u32[]', space=smem, size = 0x4, offset = 0x4, fixed_abs, tag = 'smem constant byte address 0x4 - core index']
  #allocation1 [shape = 'u32[144,128]{1,0:T(1,128)}', space=vmem, size = 0x12000, scoped, tag = 'internal scratch']
  %s0 = inlined_call_operand.hbm [shape: f32[8,128], index: 0, kind: input, shape index: {}]
  %s1 = inlined_call_operand.hbm [shape: f32[8,128], index: 1, kind: output, shape index: {}]
  %s2 = sld [smem:[#allocation0]]
  $region18: #{tpu_custom_call.1} parent=0
    _
  %s4 = ssub.s32 1, %s2
  %s5 = scalar_select 0, %s4, %s2
  $region1: #{tpu_custom_call.1} parent=0
    #allocation2 [shape = 'u8[4096]{0}', space=vmem, size = 0x1000, scoped, tag = 'input window, operand 0, single buffered']
    #allocation3 [shape = 's32[1]{0}', space=sflag, size = 0x4, scoped, tag = 'scoped memory for tpu_custom_call.1']
    #allocation4 [shape = 's32[1]{0}', space=sflag, size = 0x4, scoped, tag = 'scoped memory for tpu_custom_call.1']
    #allocation5 [shape = 'u8[4096]{0}', space=vmem, size = 0x1000, scoped, tag = 'output window, operand 0, single buffered']
    %6 = vsyncpa [#allocation3], 0
    %7 = vsyncpa [#allocation4], 0
    // Predicated region
    $region2: #{tpu_custom_call.1} parent=1 // pred_check
      _
    $region3: #{tpu_custom_call.1} parent=1 // pred_check_branch
      %9 = sbr.rel (0) target = $region5
    $region4: #{tpu_custom_call.1} parent=1 // pred_region
      %s11 = ssub.s32 128, 128
      %12 = vsyncadd [#allocation3], %s11
      %s14 = sshll.u32 [#allocation2], 4
      %s15 = int_to_ptr.vmem [resolvable:$true] %s14
      %17 = dma.hbm_to_vmem [thread:$0]  %s0, 128, %s15, [#allocation3]
    $region5: #{tpu_custom_call.1} parent=1 // pred_fallthru
      _
    // Predicated region
    $region6: #{tpu_custom_call.1} parent=1 // pred_check
      _
    $region7: #{tpu_custom_call.1} parent=1 // pred_check_branch
      %19 = sbr.rel (0) target = $region9
    $region8: #{tpu_custom_call.1} parent=1 // pred_region
      %20 = dma.done [#allocation3], 128
    $region9: #{tpu_custom_call.1} parent=1 // pred_fallthru
      _
    %v21 = vld [vmem:[#allocation2] sm:$0xff]
    %22 = vst [vmem:[#allocation5] sm:$0xff] %v21
    // Predicated region
    $region10: #{tpu_custom_call.1} parent=1 // pred_check
      _
    $region11: #{tpu_custom_call.1} parent=1 // pred_check_branch
      %24 = sbr.rel (0) target = $region13
    $region12: #{tpu_custom_call.1} parent=1 // pred_region
      %s26 = ssub.s32 128, 128
      %27 = vsyncadd [#allocation4], %s26
      %s29 = sshll.u32 [#allocation5], 4
      %s30 = int_to_ptr.vmem [resolvable:$true] %s29
      %32 = dma.vmem_to_hbm [thread:$0]  %s30, 128, %s1, [#allocation4]
    $region13: #{tpu_custom_call.1} parent=1 // pred_fallthru
      _
    // Predicated region
    $region14: #{tpu_custom_call.1} parent=1 // pred_check
      _
    $region15: #{tpu_custom_call.1} parent=1 // pred_check_branch
      %34 = sbr.rel (0) target = $region17
    $region16: #{tpu_custom_call.1} parent=1 // pred_region
      %35 = dma.done [#allocation4], 128
    $region17: #{tpu_custom_call.1} parent=1 // pred_fallthru
      _
    %36 = vsyncpa [#allocation3], 1
    %37 = vsyncpa [#allocation4], 1

// kernel: tpu_custom_call.1
$region0: #{tpu_custom_call.1}
  #allocation0 [shape = 'u32[]', space=smem, size = 0x4, offset = 0x4, fixed_abs, tag = 'smem constant byte address 0x4 - core index']
  #allocation1 [shape = 'u32[144,128]{1,0:T(1,128)}', space=vmem, size = 0x12000, scoped, tag = 'internal scratch']
  %s0 = inlined_call_operand.hbm [shape: f32[384,128], index: 0, kind: input, shape index: {}]
  %s1 = inlined_call_operand.hbm [shape: bf16[128,128], index: 1, kind: input, shape index: {}]
  %s2 = inlined_call_operand.hbm [shape: bf16[128,128], index: 2, kind: input, shape index: {}]
  %s3 = inlined_call_operand.vmem [shape: f32[2,128], index: 3, kind: input, shape index: {}]
  %s4 = inlined_call_operand.hbm [shape: f32[384,128], index: 4, kind: output, shape index: {}]
  %s5 = sld [smem:[#allocation0]]
  $region61: #{tpu_custom_call.1} parent=0
    _
  %s7 = ssub.s32 1, %s5
  %s8 = scalar_select 0, %s7, %s5
  $region1: #{tpu_custom_call.1} parent=0
    #allocation2 [shape = 'u8[196608]{0}', space=vmem, size = 0x30000, scoped, tag = 'input window, operand 0']
    #allocation3 [shape = 's32[2]{0}', space=sflag, size = 0x8, scoped, tag = 'scoped memory for tpu_custom_call.1']
    #allocation4 [shape = 's32[2]{0}', space=sflag, size = 0x8, scoped, tag = 'scoped memory for tpu_custom_call.1']
    #allocation5 [shape = 'u8[32768]{0}', space=vmem, size = 0x8000, scoped, tag = 'input window, operand 1, single buffered']
    #allocation6 [shape = 's32[1]{0}', space=sflag, size = 0x4, scoped, tag = 'scoped memory for tpu_custom_call.1']
    #allocation7 [shape = 'u8[32768]{0}', space=vmem, size = 0x8000, scoped, tag = 'input window, operand 2, single buffered']
    #allocation8 [shape = 'u8[196608]{0}', space=vmem, size = 0x30000, scoped, tag = 'output window, operand 0']
    %9 = vsyncpa [#allocation3], 0
    %s10 = scalar_lea.sflag [#allocation3], 1
    %11 = vsyncpa %s10, 0
    %12 = vsyncpa [#allocation6], 0
    %13 = vsyncpa [#allocation4], 0
    %s14 = scalar_lea.sflag [#allocation4], 1
    %15 = vsyncpa %s14, 0
    loop: start=0, step=1, limit=4
    $region2: #{tpu_custom_call.1} parent=1 // loop_pre_header
      _
    $region3: #{tpu_custom_call.1} parent=1 // loop_header
      %s17 = sphi 0, %s21
      %p18 = scmp.ge.s32.totalorder %s17, 4
      %s27 = sphi 0, %s29
      %s30 = sphi 0, %s27
      %s31 = sphi 0, %s30
      %s47 = sphi 0, %s31
      %s51 = sphi 0, %s51
      %s53 = sphi 0, %s51
      %s54 = sphi 0, %s53
      %s68 = sphi 0, %s54
      %s72 = sphi 0, %s72
      %s74 = sphi 0, %s72
      %s75 = sphi 0, %s74
      %s89 = sphi 0, %s75
      %s93 = sphi 0, %s93
      %s95 = sphi 0, %s93
      %s96 = sphi 0, %s95
      %s110 = sphi 0, %s96
      %s116 = sphi 0, %s118
      %s119 = sphi 0, %s116
      %s120 = sphi 0, %s119
      %s136 = sphi 0, %s120
    $region4: #{tpu_custom_call.1} parent=1 // loop_header_branch
      %20 = sbr.rel (%p18) target = $region8
    $region5: #{tpu_custom_call.1} parent=1 // loop_body
      %s22 = ssub.s32 %s17, 1
      %s23 = ssub.s32 %s17, 2
      %s24 = sadd.s32 %s17, 1
      %s25 = ssub.s32 %s17, %s24
      %p26 = scmp.eq.s32.totalorder %s25, 0
      %s28 = sadd.s32 %s27, 1
      %s29 = scalar_select %p26, %s27, %s28
      %p32 = pneg %p26
      %p33 = scmp.eq.s32.totalorder %s17, 1
      %p34 = por %p32, %p33
      %p35 = scmp.ne.s32.totalorder %s27, %s30
      %p36 = scmp.eq.s32.totalorder %s17, 0
      %p37 = por %p35, %p36
      %p38 = scmp.ne.s32.totalorder %s27, %s30
      %p39 = scmp.eq.s32.totalorder %s22, 1
      %p40 = por %p38, %p39
      %p41 = scmp.ne.s32.totalorder %s30, %s31
      %p42 = scmp.eq.s32.totalorder %s22, 0
      %p43 = por %p41, %p42
      %p44 = scmp.ne.s32.totalorder %s30, %s31
      %p45 = scmp.eq.s32.totalorder %s23, 1
      %p46 = por %p44, %p45
      %p48 = scmp.ne.s32.totalorder %s31, %s47
      %p49 = scmp.eq.s32.totalorder %s23, 0
      %p50 = por %p48, %p49
      %s52 = sadd.s32 %s51, 1
      %p55 = scmp.eq.s32.totalorder %s17, 1
      %p56 = scmp.ne.s32.totalorder %s51, %s53
      %p57 = scmp.eq.s32.totalorder %s17, 0
      %p58 = por %p56, %p57
      %p59 = scmp.ne.s32.totalorder %s51, %s53
      %p60 = scmp.eq.s32.totalorder %s22, 1
      %p61 = por %p59, %p60
      %p62 = scmp.ne.s32.totalorder %s53, %s54
      %p63 = scmp.eq.s32.totalorder %s22, 0
      %p64 = por %p62, %p63
      %p65 = scmp.ne.s32.totalorder %s53, %s54
      %p66 = scmp.eq.s32.totalorder %s23, 1
      %p67 = por %p65, %p66
      %p69 = scmp.ne.s32.totalorder %s54, %s68
      %p70 = scmp.eq.s32.totalorder %s23, 0
      %p71 = por %p69, %p70
      %s73 = sadd.s32 %s72, 1
      %p76 = scmp.eq.s32.totalorder %s17, 1
      %p77 = scmp.ne.s32.totalorder %s72, %s74
      %p78 = scmp.eq.s32.totalorder %s17, 0
      %p79 = por %p77, %p78
      %p80 = scmp.ne.s32.totalorder %s72, %s74
      %p81 = scmp.eq.s32.totalorder %s22, 1
      %p82 = por %p80, %p81
      %p83 = scmp.ne.s32.totalorder %s74, %s75
      %p84 = scmp.eq.s32.totalorder %s22, 0
      %p85 = por %p83, %p84
      %p86 = scmp.ne.s32.totalorder %s74, %s75
      %p87 = scmp.eq.s32.totalorder %s23, 1
      %p88 = por %p86, %p87
      %p90 = scmp.ne.s32.totalorder %s75, %s89
      %p91 = scmp.eq.s32.totalorder %s23, 0
      %p92 = por %p90, %p91
      %s94 = sadd.s32 %s93, 1
      %p97 = scmp.eq.s32.totalorder %s17, 1
      %p98 = scmp.ne.s32.totalorder %s93, %s95
      %p99 = scmp.eq.s32.totalorder %s17, 0
      %p100 = por %p98, %p99
      %p101 = scmp.ne.s32.totalorder %s93, %s95
      %p102 = scmp.eq.s32.totalorder %s22, 1
      %p103 = por %p101, %p102
      %p104 = scmp.ne.s32.totalorder %s95, %s96
      %p105 = scmp.eq.s32.totalorder %s22, 0
      %p106 = por %p104, %p105
      %p107 = scmp.ne.s32.totalorder %s95, %s96
      %p108 = scmp.eq.s32.totalorder %s23, 1
      %p109 = por %p107, %p108
      %p111 = scmp.ne.s32.totalorder %s96, %s110
      %p112 = scmp.eq.s32.totalorder %s23, 0
      %p113 = por %p111, %p112
      %s114 = ssub.s32 %s17, %s24
      %p115 = scmp.eq.s32.totalorder %s114, 0
      %s117 = sadd.s32 %s116, 1
      %s118 = scalar_select %p115, %s116, %s117
      %p121 = pneg %p115
      %p122 = scmp.eq.s32.totalorder %s17, 1
      %p123 = por %p121, %p122
      %p124 = scmp.ne.s32.totalorder %s116, %s119
      %p125 = scmp.eq.s32.totalorder %s17, 0
      %p126 = por %p124, %p125
      %p127 = scmp.ne.s32.totalorder %s116, %s119
      %p128 = scmp.eq.s32.totalorder %s22, 1
      %p129 = por %p127, %p128
      %p130 = scmp.ne.s32.totalorder %s119, %s120
      %p131 = scmp.eq.s32.totalorder %s22, 0
      %p132 = por %p130, %p131
      %p133 = scmp.ne.s32.totalorder %s119, %s120
      %p134 = scmp.eq.s32.totalorder %s23, 1
      %p135 = por %p133, %p134
      %p137 = scmp.ne.s32.totalorder %s120, %s136
      %p138 = scmp.eq.s32.totalorder %s23, 0
      %p139 = por %p137, %p138
      %p140 = scmp.le.s32.totalorder 1, %s17
      %p141 = scmp.lt.s32.totalorder %s17, 3
      %p142 = pnand %p140, %p141
      %p143 = pneg %p142
      // Predicated region
      $region9: #{tpu_custom_call.1} parent=5 // pred_check
        _
      $region10: #{tpu_custom_call.1} parent=5 // pred_check_branch
        %145 = sbr.rel (%p142) target = $region12
      $region11: #{tpu_custom_call.1} parent=5 // pred_region
        %s146 = ssub.s32 %s17, 1
        // Predicated region
        $region13: #{tpu_custom_call.1} parent=11 // pred_check
          %p147 = pneg %p64
        $region14: #{tpu_custom_call.1} parent=11 // pred_check_branch
          %149 = sbr.rel (%p147) target = $region16
        $region15: #{tpu_custom_call.1} parent=11 // pred_region
          %s151 = ssub.s32 1024, 1024
          %152 = vsyncadd [#allocation6], %s151
          %s153 = sshll.u32 [#allocation5], 4
          %s154 = int_to_ptr.vmem [resolvable:$true] %s153
          %159 = dma.hbm_to_vmem [thread:$0]  %s1, 1024, %s154, [#allocation6], 64, 64, 4
        $region16: #{tpu_custom_call.1} parent=11 // pred_fallthru
          _
        // Predicated region
        $region17: #{tpu_custom_call.1} parent=11 // pred_check
          %p160 = pneg %p85
        $region18: #{tpu_custom_call.1} parent=11 // pred_check_branch
          %162 = sbr.rel (%p160) target = $region20
        $region19: #{tpu_custom_call.1} parent=11 // pred_region
          %s164 = ssub.s32 1024, 1024
          %165 = vsyncadd [#allocation6], %s164
          %s166 = sshll.u32 [#allocation7], 4
          %s167 = int_to_ptr.vmem [resolvable:$true] %s166
          %172 = dma.hbm_to_vmem [thread:$0]  %s2, 1024, %s167, [#allocation6], 64, 64, 4
        $region20: #{tpu_custom_call.1} parent=11 // pred_fallthru
          _
        // Predicated region
        $region21: #{tpu_custom_call.1} parent=11 // pred_check
          %p173 = pneg %p106
        $region22: #{tpu_custom_call.1} parent=11 // pred_check_branch
          %175 = sbr.rel (%p173) target = $region24
        $region23: #{tpu_custom_call.1} parent=11 // pred_region
          _
        $region24: #{tpu_custom_call.1} parent=11 // pred_fallthru
          _
      $region12: #{tpu_custom_call.1} parent=5 // pred_fallthru
        _
      %p176 = scmp.lt.s32.totalorder %s17, 2
      // Predicated region
      $region25: #{tpu_custom_call.1} parent=5 // pred_check
        %p177 = pneg %p176
      $region26: #{tpu_custom_call.1} parent=5 // pred_check_branch
        %179 = sbr.rel (%p177) target = $region28
      $region27: #{tpu_custom_call.1} parent=5 // pred_region
        // Predicated region
        $region29: #{tpu_custom_call.1} parent=27 // pred_check
          %p180 = pneg %p37
        $region30: #{tpu_custom_call.1} parent=27 // pred_check_branch
          %182 = sbr.rel (%p180) target = $region32
        $region31: #{tpu_custom_call.1} parent=27 // pred_region
          %s183 = sand.u32 %s27, 1
          %s184 = scalar_lea.sflag [#allocation3], %s183
          %s185 = sand.u32 %s27, 1
          %s186 = smul.addr %s185, 192
          %s187 = scalar_lea.vmem [#allocation2], %s186
          %s188 = smul.u32 24, %s17
          %s190 = ssub.s32 3072, 3072
          %191 = vsyncadd %s184, %s190
          %s192 = smul.addr %s188, 128
          %s193 = scalar_lea.hbm %s0, %s192
          %s194 = sshll.u32 %s187, 4
          %s195 = int_to_ptr.vmem [resolvable:$true] %s194
          %200 = dma.hbm_to_vmem [thread:$0]  %s193, 3072, %s195, %s184, 128, 128, 8
        $region32: #{tpu_custom_call.1} parent=27 // pred_fallthru
          _
      $region28: #{tpu_custom_call.1} parent=5 // pred_fallthru
        _
      %p201 = scmp.le.s32.totalorder 1, %s17
      %p202 = scmp.lt.s32.totalorder %s17, 3
      %p203 = pnand %p201, %p202
      %p204 = pneg %p203
      // Predicated region
      $region33: #{tpu_custom_call.1} parent=5 // pred_check
        _
      $region34: #{tpu_custom_call.1} parent=5 // pred_check_branch
        %206 = sbr.rel (%p203) target = $region36
      $region35: #{tpu_custom_call.1} parent=5 // pred_region
        %s207 = ssub.s32 %s17, 1
        %s208 = sand.u32 %s30, 1
        %s209 = scalar_lea.sflag [#allocation3], %s208
        %s210 = sand.u32 %s30, 1
        %s211 = smul.addr %s210, 192
        %s212 = scalar_lea.vmem [#allocation2], %s211
        // Predicated region
        $region37: #{tpu_custom_call.1} parent=35 // pred_check
          %p213 = pneg %p43
        $region38: #{tpu_custom_call.1} parent=35 // pred_check_branch
          %215 = sbr.rel (%p213) target = $region40
        $region39: #{tpu_custom_call.1} parent=35 // pred_region
          %216 = dma.done %s209, 3072
        $region40: #{tpu_custom_call.1} parent=35 // pred_fallthru
          _
        // Predicated region
        $region41: #{tpu_custom_call.1} parent=35 // pred_check
          %p217 = pneg %p64
        $region42: #{tpu_custom_call.1} parent=35 // pred_check_branch
          %219 = sbr.rel (%p217) target = $region44
        $region43: #{tpu_custom_call.1} parent=35 // pred_region
          %220 = dma.done [#allocation6], 1024
        $region44: #{tpu_custom_call.1} parent=35 // pred_fallthru
          _
        // Predicated region
        $region45: #{tpu_custom_call.1} parent=35 // pred_check
          %p221 = pneg %p85
        $region46: #{tpu_custom_call.1} parent=35 // pred_check_branch
          %223 = sbr.rel (%p221) target = $region48
        $region47: #{tpu_custom_call.1} parent=35 // pred_region
          %224 = dma.done [#allocation6], 1024
        $region48: #{tpu_custom_call.1} parent=35 // pred_fallthru
          _
        %s225 = sand.u32 %s30, 1
        %s226 = scalar_lea.sflag [#allocation3], %s225
        %s227 = sand.u32 %s30, 1
        %s228 = smul.addr %s227, 192
        %s229 = scalar_lea.vmem [#allocation2], %s228
        %p230 = pneg %p43
        %p231 = pneg %p40
        %p232 = pneg %p64
        %p233 = pneg %p61
        %p234 = pneg %p85
        %p235 = pneg %p82
        %p236 = pneg %p106
        %p237 = pneg %p103
        %p238 = pneg %p132
        %p239 = pneg %p129
        %s240 = sand.u32 %s119, 1
        %s241 = scalar_lea.sflag [#allocation4], %s240
        %s242 = sand.u32 %s119, 1
        %s243 = smul.addr %s242, 192
        %s244 = scalar_lea.vmem [#allocation8], %s243
        %s245 = smul.u32 24, %s22
        %s246 = smul.u32 24, %s22
        %v248 = vld [vmem:[%s212] sm:$0xff]
        %v249 = vld [vmem:[%s212 + $0x8] sm:$0xff]
        %v250 = vld [vmem:[%s212 + $0x10] sm:$0xff]
        %v251 = vld [vmem:[%s212 + $0x18] sm:$0xff]
        %v252 = vld [vmem:[%s212 + $0x20] sm:$0xff]
        %v253 = vld [vmem:[%s212 + $0x28] sm:$0xff]
        %v254 = vld [vmem:[%s212 + $0x30] sm:$0xff]
        %v255 = vld [vmem:[%s212 + $0x38] sm:$0xff]
        %v256 = vld [vmem:[%s212 + $0x40] sm:$0xff]
        %v257 = vld [vmem:[%s212 + $0x48] sm:$0xff]
        %v258 = vld [vmem:[%s212 + $0x50] sm:$0xff]
        %v259 = vld [vmem:[%s212 + $0x58] sm:$0xff]
        %v260 = vld [vmem:[%s212 + $0x60] sm:$0xff]
        %v261 = vld [vmem:[%s212 + $0x68] sm:$0xff]
        %v262 = vld [vmem:[%s212 + $0x70] sm:$0xff]
        %v263 = vld [vmem:[%s212 + $0x78] sm:$0xff]
        %v264 = vld [vmem:[%s212 + $0x80] sm:$0xff]
        %v265 = vld [vmem:[%s212 + $0x88] sm:$0xff]
        %v266 = vld [vmem:[%s212 + $0x90] sm:$0xff]
        %v267 = vld [vmem:[%s212 + $0x98] sm:$0xff]
        %v268 = vld [vmem:[%s212 + $0xa0] sm:$0xff]
        %v269 = vld [vmem:[%s212 + $0xa8] sm:$0xff]
        %v270 = vld [vmem:[%s212 + $0xb0] sm:$0xff]
        %v271 = vld [vmem:[%s212 + $0xb8] sm:$0xff]
        %v272 = vpack.c.bf16 %v249, %v248
        %v273 = vpack.c.bf16 %v251, %v250
        %v274 = vpack.c.bf16 %v253, %v252
        %v275 = vpack.c.bf16 %v255, %v254
        %v276 = vpack.c.bf16 %v257, %v256
        %v277 = vpack.c.bf16 %v259, %v258
        %v278 = vpack.c.bf16 %v261, %v260
        %v279 = vpack.c.bf16 %v263, %v262
        %v280 = vpack.c.bf16 %v265, %v264
        %v281 = vpack.c.bf16 %v267, %v266
        %v282 = vpack.c.bf16 %v269, %v268
        %v283 = vpack.c.bf16 %v271, %v270
        %v284 = vld [vmem:[#allocation5] sm:$0xf]
        %v285 = vld [vmem:[#allocation5 + $0x4] sm:$0xf]
        %v286 = vld [vmem:[#allocation5 + $0x8] sm:$0xf]
        %v287 = vld [vmem:[#allocation5 + $0xc] sm:$0xf]
        %v288 = vld [vmem:[#allocation5 + $0x10] sm:$0xf]
        %v289 = vld [vmem:[#allocation5 + $0x14] sm:$0xf]
        %v290 = vld [vmem:[#allocation5 + $0x18] sm:$0xf]
        %v291 = vld [vmem:[#allocation5 + $0x1c] sm:$0xf]
        %v292 = vld [vmem:[#allocation5 + $0x20] sm:$0xf]
        %v293 = vld [vmem:[#allocation5 + $0x24] sm:$0xf]
        %v294 = vld [vmem:[#allocation5 + $0x28] sm:$0xf]
        %v295 = vld [vmem:[#allocation5 + $0x2c] sm:$0xf]
        %v296 = vld [vmem:[#allocation5 + $0x30] sm:$0xf]
        %v297 = vld [vmem:[#allocation5 + $0x34] sm:$0xf]
        %v298 = vld [vmem:[#allocation5 + $0x38] sm:$0xf]
        %v299 = vld [vmem:[#allocation5 + $0x3c] sm:$0xf]
        %v300 = vld [vmem:[%s3] sm:$0x1]
        %v301 = vlaneseq
        %v302 = vshrl.u32 %v301, 7
        %v303 = vsub.s32 0, %v302
        %v304 = vrot.slane %v300, %v303
        %v321 = vunpack.c.l.b16 %v284
        %v322 = vunpack.c.l.b16 %v285
        %v323 = vunpack.c.l.b16 %v286
        %v324 = vunpack.c.l.b16 %v287
        %v325 = vunpack.c.l.b16 %v288
        %v326 = vunpack.c.l.b16 %v289
        %v327 = vunpack.c.l.b16 %v290
        %v328 = vunpack.c.l.b16 %v291
        %v329 = vunpack.c.l.b16 %v292
        %v330 = vunpack.c.l.b16 %v293
        %v331 = vunpack.c.l.b16 %v294
        %v332 = vunpack.c.l.b16 %v295
        %v333 = vunpack.c.l.b16 %v296
        %v334 = vunpack.c.l.b16 %v297
        %v335 = vunpack.c.l.b16 %v298
        %v336 = vunpack.c.l.b16 %v299
        %v337 = vpack.c.b16 %v322, %v321
        %v338 = vpack.c.b16 %v324, %v323
        %v339 = vpack.c.b16 %v326, %v325
        %v340 = vpack.c.b16 %v328, %v327
        %v341 = vpack.c.b16 %v330, %v329
        %v342 = vpack.c.b16 %v332, %v331
        %v343 = vpack.c.b16 %v334, %v333
        %v344 = vpack.c.b16 %v336, %v335
        %353 = vmatprep.subr.bf16.mxu0 0
        %354 = vmatpush1.bf16.msra.mxu0 %v337
        %355 = vmatprep.subr.bf16.mxu0 0
        %356 = vmatpush1.bf16.msra.mxu0 %v338
        %357 = vmatprep.subr.bf16.mxu0 0
        %358 = vmatpush1.bf16.msra.mxu0 %v339
        %359 = vmatprep.subr.bf16.mxu0 0
        %360 = vmatpush1.bf16.msra.mxu0 %v340
        %361 = vmatprep.subr.bf16.mxu0 0
        %362 = vmatpush1.bf16.msra.mxu0 %v341
        %363 = vmatprep.subr.bf16.mxu0 0
        %364 = vmatpush1.bf16.msra.mxu0 %v342
        %365 = vmatprep.subr.bf16.mxu0 0
        %366 = vmatpush1.bf16.msra.mxu0 %v343
        %367 = vmatprep.subr.bf16.mxu0 0
        %368 = vmatpush1.bf16.msra.mxu0 %v344
        %369 = vmatprep.subr.bf16.mxu0 0
        %370 = vmatpush1.bf16.msra.mxu0 0
        %371 = vmatprep.subr.bf16.mxu0 0
        %372 = vmatpush1.bf16.msra.mxu0 0
        %373 = vmatprep.subr.bf16.mxu0 0
        %374 = vmatpush1.bf16.msra.mxu0 0
        %375 = vmatprep.subr.bf16.mxu0 0
        %376 = vmatpush1.bf16.msra.mxu0 0
        %377 = vmatprep.subr.bf16.mxu0 0
        %378 = vmatpush1.bf16.msra.mxu0 0
        %379 = vmatprep.subr.bf16.mxu0 0
        %380 = vmatpush1.bf16.msra.mxu0 0
        %381 = vmatprep.subr.bf16.mxu0 0
        %382 = vmatpush1.bf16.msra.mxu0 0
        %383 = vmatprep.subr.bf16.mxu0 0
        %384 = vmatpush1.bf16.msra.mxu0 0
        %385 = vmatprep.mubr.bf16.mxu0 0
        %386 = vmatmul.mubr.bf16.gmra.mrb[0].mxu0 %v272
        %v387 = vpop.f32.mrb[0].mxu0
        %v388 = vadd.f32 %v304, %v387
        %v389 = vpop.f32.mrb[0].mxu0
        %v390 = vpop.f32.mrb[0].mxu0
        %v391 = vadd.f32 %v304, %v390
        %v392 = vpop.f32.mrb[0].mxu0
        %393 = vmatprep.mubr.bf16.mxu0 0
        %394 = vmatmul.mubr.bf16.gmra.mrb[0].mxu0 %v273
        %v395 = vpop.f32.mrb[0].mxu0
        %v396 = vadd.f32 %v304, %v395
        %v397 = vpop.f32.mrb[0].mxu0
        %v398 = vpop.f32.mrb[0].mxu0
        %v399 = vadd.f32 %v304, %v398
        %v400 = vpop.f32.mrb[0].mxu0
        %401 = vmatprep.mubr.bf16.mxu0 0
        %402 = vmatmul.mubr.bf16.gmra.mrb[0].mxu0 %v274
        %v403 = vpop.f32.mrb[0].mxu0
        %v404 = vadd.f32 %v304, %v403
        %v405 = vpop.f32.mrb[0].mxu0
        %v406 = vpop.f32.mrb[0].mxu0
        %v407 = vadd.f32 %v304, %v406
        %v408 = vpop.f32.mrb[0].mxu0
        %409 = vmatprep.mubr.bf16.mxu0 0
        %410 = vmatmul.mubr.bf16.gmra.mrb[0].mxu0 %v275
        %v411 = vpop.f32.mrb[0].mxu0
        %v412 = vadd.f32 %v304, %v411
        %v413 = vpop.f32.mrb[0].mxu0
        %v414 = vpop.f32.mrb[0].mxu0
        %v415 = vadd.f32 %v304, %v414
        %v416 = vpop.f32.mrb[0].mxu0
        %417 = vmatprep.mubr.bf16.mxu0 0
        %418 = vmatmul.mubr.bf16.gmra.mrb[0].mxu0 %v276
        %v419 = vpop.f32.mrb[0].mxu0
        %v420 = vadd.f32 %v304, %v419
        %v421 = vpop.f32.mrb[0].mxu0
        %v422 = vpop.f32.mrb[0].mxu0
        %v423 = vadd.f32 %v304, %v422
        %v424 = vpop.f32.mrb[0].mxu0
        %425 = vmatprep.mubr.bf16.mxu0 0
        %426 = vmatmul.mubr.bf16.gmra.mrb[0].mxu0 %v277
        %v427 = vpop.f32.mrb[0].mxu0
        %v428 = vadd.f32 %v304, %v427
        %v429 = vpop.f32.mrb[0].mxu0
        %v430 = vpop.f32.mrb[0].mxu0
        %v431 = vadd.f32 %v304, %v430
        %v432 = vpop.f32.mrb[0].mxu0
        %433 = vmatprep.mubr.bf16.mxu0 0
        %434 = vmatmul.mubr.bf16.gmra.mrb[0].mxu0 %v278
        %v435 = vpop.f32.mrb[0].mxu0
        %v436 = vadd.f32 %v304, %v435
        %v437 = vpop.f32.mrb[0].mxu0
        %v438 = vpop.f32.mrb[0].mxu0
        %v439 = vadd.f32 %v304, %v438
        %v440 = vpop.f32.mrb[0].mxu0
        %441 = vmatprep.mubr.bf16.mxu0 0
        %442 = vmatmul.mubr.bf16.gmra.mrb[0].mxu0 %v279
        %v443 = vpop.f32.mrb[0].mxu0
        %v444 = vadd.f32 %v304, %v443
        %v445 = vpop.f32.mrb[0].mxu0
        %v446 = vpop.f32.mrb[0].mxu0
        %v447 = vadd.f32 %v304, %v446
        %v448 = vpop.f32.mrb[0].mxu0
        %449 = vmatprep.mubr.bf16.mxu0 0
        %450 = vmatmul.mubr.bf16.gmra.mrb[0].mxu0 %v280
        %v451 = vpop.f32.mrb[0].mxu0
        %v452 = vadd.f32 %v304, %v451
        %v453 = vpop.f32.mrb[0].mxu0
        %v454 = vpop.f32.mrb[0].mxu0
        %v455 = vadd.f32 %v304, %v454
        %v456 = vpop.f32.mrb[0].mxu0
        %457 = vmatprep.mubr.bf16.mxu0 0
        %458 = vmatmul.mubr.bf16.gmra.mrb[0].mxu0 %v281
        %v459 = vpop.f32.mrb[0].mxu0
        %v460 = vadd.f32 %v304, %v459
        %v461 = vpop.f32.mrb[0].mxu0
        %v462 = vpop.f32.mrb[0].mxu0
        %v463 = vadd.f32 %v304, %v462
        %v464 = vpop.f32.mrb[0].mxu0
        %465 = vmatprep.mubr.bf16.mxu0 0
        %466 = vmatmul.mubr.bf16.gmra.mrb[0].mxu0 %v282
        %v467 = vpop.f32.mrb[0].mxu0
        %v468 = vadd.f32 %v304, %v467
        %v469 = vpop.f32.mrb[0].mxu0
        %v470 = vpop.f32.mrb[0].mxu0
        %v471 = vadd.f32 %v304, %v470
        %v472 = vpop.f32.mrb[0].mxu0
        %473 = vmatprep.mubr.bf16.mxu0 0
        %474 = vmatmul.mubr.bf16.gmra.mrb[0].mxu0 %v283
        %v475 = vpop.f32.mrb[0].mxu0
        %v476 = vadd.f32 %v304, %v475
        %v477 = vpop.f32.mrb[0].mxu0
        %v478 = vpop.f32.mrb[0].mxu0
        %v479 = vadd.f32 %v304, %v478
        %v480 = vpop.f32.mrb[0].mxu0
        %481 = vdwg.mxu0
        %v482 = vmul.f32 %v388, 0.2
        %v483 = vmul.f32 %v391, 0.2
        %v484 = vmul.f32 %v396, 0.2
        %v485 = vmul.f32 %v399, 0.2
        %v486 = vmul.f32 %v404, 0.2
        %v487 = vmul.f32 %v407, 0.2
        %v488 = vmul.f32 %v412, 0.2
        %v489 = vmul.f32 %v415, 0.2
        %v490 = vmul.f32 %v420, 0.2
        %v491 = vmul.f32 %v423, 0.2
        %v492 = vmul.f32 %v428, 0.2
        %v493 = vmul.f32 %v431, 0.2
        %v494 = vmul.f32 %v436, 0.2
        %v495 = vmul.f32 %v439, 0.2
        %v496 = vmul.f32 %v444, 0.2
        %v497 = vmul.f32 %v447, 0.2
        %v498 = vmul.f32 %v452, 0.2
        %v499 = vmul.f32 %v455, 0.2
        %v500 = vmul.f32 %v460, 0.2
        %v501 = vmul.f32 %v463, 0.2
        %v502 = vmul.f32 %v468, 0.2
        %v503 = vmul.f32 %v471, 0.2
        %v504 = vmul.f32 %v476, 0.2
        %v505 = vmul.f32 %v479, 0.2
        %v506 = vmax.f32 %v388, %v482
        %v507 = vmax.f32 %v391, %v483
        %v508 = vmax.f32 %v396, %v484
        %v509 = vmax.f32 %v399, %v485
        %v510 = vmax.f32 %v404, %v486
        %v511 = vmax.f32 %v407, %v487
        %v512 = vmax.f32 %v412, %v488
        %v513 = vmax.f32 %v415, %v489
        %v514 = vmax.f32 %v420, %v490
        %v515 = vmax.f32 %v423, %v491
        %v516 = vmax.f32 %v428, %v492
        %v517 = vmax.f32 %v431, %v493
        %v518 = vmax.f32 %v436, %v494
        %v519 = vmax.f32 %v439, %v495
        %v520 = vmax.f32 %v444, %v496
        %v521 = vmax.f32 %v447, %v497
        %v522 = vmax.f32 %v452, %v498
        %v523 = vmax.f32 %v455, %v499
        %v524 = vmax.f32 %v460, %v500
        %v525 = vmax.f32 %v463, %v501
        %v526 = vmax.f32 %v468, %v502
        %v527 = vmax.f32 %v471, %v503
        %v528 = vmax.f32 %v476, %v504
        %v529 = vmax.f32 %v479, %v505
        %v530 = vpack.c.bf16 %v507, %v506
        %v531 = vpack.c.bf16 %v509, %v508
        %v532 = vpack.c.bf16 %v511, %v510
        %v533 = vpack.c.bf16 %v513, %v512
        %v534 = vpack.c.bf16 %v515, %v514
        %v535 = vpack.c.bf16 %v517, %v516
        %v536 = vpack.c.bf16 %v519, %v518
        %v537 = vpack.c.bf16 %v521, %v520
        %v538 = vpack.c.bf16 %v523, %v522
        %v539 = vpack.c.bf16 %v525, %v524
        %v540 = vpack.c.bf16 %v527, %v526
        %v541 = vpack.c.bf16 %v529, %v528
        %v542 = vld [vmem:[#allocation7] sm:$0xf]
        %v543 = vld [vmem:[#allocation7 + $0x4] sm:$0xf]
        %v544 = vld [vmem:[#allocation7 + $0x8] sm:$0xf]
        %v545 = vld [vmem:[#allocation7 + $0xc] sm:$0xf]
        %v546 = vld [vmem:[#allocation7 + $0x10] sm:$0xf]
        %v547 = vld [vmem:[#allocation7 + $0x14] sm:$0xf]
        %v548 = vld [vmem:[#allocation7 + $0x18] sm:$0xf]
        %v549 = vld [vmem:[#allocation7 + $0x1c] sm:$0xf]
        %v550 = vld [vmem:[#allocation7 + $0x20] sm:$0xf]
        %v551 = vld [vmem:[#allocation7 + $0x24] sm:$0xf]
        %v552 = vld [vmem:[#allocation7 + $0x28] sm:$0xf]
        %v553 = vld [vmem:[#allocation7 + $0x2c] sm:$0xf]
        %v554 = vld [vmem:[#allocation7 + $0x30] sm:$0xf]
        %v555 = vld [vmem:[#allocation7 + $0x34] sm:$0xf]
        %v556 = vld [vmem:[#allocation7 + $0x38] sm:$0xf]
        %v557 = vld [vmem:[#allocation7 + $0x3c] sm:$0xf]
        %v558 = vld [vmem:[%s3 + $0x1] sm:$0x1]
        %v559 = vlaneseq
        %v560 = vshrl.u32 %v559, 7
        %v561 = vsub.s32 0, %v560
        %v562 = vrot.slane %v558, %v561
        %v579 = vunpack.c.l.b16 %v542
        %v580 = vunpack.c.l.b16 %v543
        %v581 = vunpack.c.l.b16 %v544
        %v582 = vunpack.c.l.b16 %v545
        %v583 = vunpack.c.l.b16 %v546
        %v584 = vunpack.c.l.b16 %v547
        %v585 = vunpack.c.l.b16 %v548
        %v586 = vunpack.c.l.b16 %v549
        %v587 = vunpack.c.l.b16 %v550
        %v588 = vunpack.c.l.b16 %v551
        %v589 = vunpack.c.l.b16 %v552
        %v590 = vunpack.c.l.b16 %v553
        %v591 = vunpack.c.l.b16 %v554
        %v592 = vunpack.c.l.b16 %v555
        %v593 = vunpack.c.l.b16 %v556
        %v594 = vunpack.c.l.b16 %v557
        %v595 = vpack.c.b16 %v580, %v579
        %v596 = vpack.c.b16 %v582, %v581
        %v597 = vpack.c.b16 %v584, %v583
        %v598 = vpack.c.b16 %v586, %v585
        %v599 = vpack.c.b16 %v588, %v587
        %v600 = vpack.c.b16 %v590, %v589
        %v601 = vpack.c.b16 %v592, %v591
        %v602 = vpack.c.b16 %v594, %v593
        %611 = vmatprep.subr.bf16.mxu0 0
        %612 = vmatpush1.bf16.msra.mxu0 %v595
        %613 = vmatprep.subr.bf16.mxu0 0
        %614 = vmatpush1.bf16.msra.mxu0 %v596
        %615 = vmatprep.subr.bf16.mxu0 0
        %616 = vmatpush1.bf16.msra.mxu0 %v597
        %617 = vmatprep.subr.bf16.mxu0 0
        %618 = vmatpush1.bf16.msra.mxu0 %v598
        %619 = vmatprep.subr.bf16.mxu0 0
        %620 = vmatpush1.bf16.msra.mxu0 %v599
        %621 = vmatprep.subr.bf16.mxu0 0
        %622 = vmatpush1.bf16.msra.mxu0 %v600
        %623 = vmatprep.subr.bf16.mxu0 0
        %624 = vmatpush1.bf16.msra.mxu0 %v601
        %625 = vmatprep.subr.bf16.mxu0 0
        %626 = vmatpush1.bf16.msra.mxu0 %v602
        %627 = vmatprep.subr.bf16.mxu0 0
        %628 = vmatpush1.bf16.msra.mxu0 0
        %629 = vmatprep.subr.bf16.mxu0 0
        %630 = vmatpush1.bf16.msra.mxu0 0
        %631 = vmatprep.subr.bf16.mxu0 0
        %632 = vmatpush1.bf16.msra.mxu0 0
        %633 = vmatprep.subr.bf16.mxu0 0
        %634 = vmatpush1.bf16.msra.mxu0 0
        %635 = vmatprep.subr.bf16.mxu0 0
        %636 = vmatpush1.bf16.msra.mxu0 0
        %637 = vmatprep.subr.bf16.mxu0 0
        %638 = vmatpush1.bf16.msra.mxu0 0
        %639 = vmatprep.subr.bf16.mxu0 0
        %640 = vmatpush1.bf16.msra.mxu0 0
        %641 = vmatprep.subr.bf16.mxu0 0
        %642 = vmatpush1.bf16.msra.mxu0 0
        %643 = vmatprep.mubr.bf16.mxu0 0
        %644 = vmatmul.mubr.bf16.gmra.mrb[0].mxu0 %v530
        %v645 = vpop.f32.mrb[0].mxu0
        %v646 = vadd.f32 %v562, %v645
        %v647 = vpop.f32.mrb[0].mxu0
        %v648 = vpop.f32.mrb[0].mxu0
        %v649 = vadd.f32 %v562, %v648
        %v650 = vpop.f32.mrb[0].mxu0
        %651 = vmatprep.mubr.bf16.mxu0 0
        %652 = vmatmul.mubr.bf16.gmra.mrb[0].mxu0 %v531
        %v653 = vpop.f32.mrb[0].mxu0
        %v654 = vadd.f32 %v562, %v653
        %v655 = vpop.f32.mrb[0].mxu0
        %v656 = vpop.f32.mrb[0].mxu0
        %v657 = vadd.f32 %v562, %v656
        %v658 = vpop.f32.mrb[0].mxu0
        %659 = vmatprep.mubr.bf16.mxu0 0
        %660 = vmatmul.mubr.bf16.gmra.mrb[0].mxu0 %v532
        %v661 = vpop.f32.mrb[0].mxu0
        %v662 = vadd.f32 %v562, %v661
        %v663 = vpop.f32.mrb[0].mxu0
        %v664 = vpop.f32.mrb[0].mxu0
        %v665 = vadd.f32 %v562, %v664
        %v666 = vpop.f32.mrb[0].mxu0
        %667 = vmatprep.mubr.bf16.mxu0 0
        %668 = vmatmul.mubr.bf16.gmra.mrb[0].mxu0 %v533
        %v669 = vpop.f32.mrb[0].mxu0
        %v670 = vadd.f32 %v562, %v669
        %v671 = vpop.f32.mrb[0].mxu0
        %v672 = vpop.f32.mrb[0].mxu0
        %v673 = vadd.f32 %v562, %v672
        %v674 = vpop.f32.mrb[0].mxu0
        %675 = vmatprep.mubr.bf16.mxu0 0
        %676 = vmatmul.mubr.bf16.gmra.mrb[0].mxu0 %v534
        %v677 = vpop.f32.mrb[0].mxu0
        %v678 = vadd.f32 %v562, %v677
        %v679 = vpop.f32.mrb[0].mxu0
        %v680 = vpop.f32.mrb[0].mxu0
        %v681 = vadd.f32 %v562, %v680
        %v682 = vpop.f32.mrb[0].mxu0
        %683 = vmatprep.mubr.bf16.mxu0 0
        %684 = vmatmul.mubr.bf16.gmra.mrb[0].mxu0 %v535
        %v685 = vpop.f32.mrb[0].mxu0
        %v686 = vadd.f32 %v562, %v685
        %v687 = vpop.f32.mrb[0].mxu0
        %v688 = vpop.f32.mrb[0].mxu0
        %v689 = vadd.f32 %v562, %v688
        %v690 = vpop.f32.mrb[0].mxu0
        %691 = vmatprep.mubr.bf16.mxu0 0
        %692 = vmatmul.mubr.bf16.gmra.mrb[0].mxu0 %v536
        %v693 = vpop.f32.mrb[0].mxu0
        %v694 = vadd.f32 %v562, %v693
        %v695 = vpop.f32.mrb[0].mxu0
        %v696 = vpop.f32.mrb[0].mxu0
        %v697 = vadd.f32 %v562, %v696
        %v698 = vpop.f32.mrb[0].mxu0
        %699 = vmatprep.mubr.bf16.mxu0 0
        %700 = vmatmul.mubr.bf16.gmra.mrb[0].mxu0 %v537
        %v701 = vpop.f32.mrb[0].mxu0
        %v702 = vadd.f32 %v562, %v701
        %v703 = vpop.f32.mrb[0].mxu0
        %v704 = vpop.f32.mrb[0].mxu0
        %v705 = vadd.f32 %v562, %v704
        %v706 = vpop.f32.mrb[0].mxu0
        %707 = vmatprep.mubr.bf16.mxu0 0
        %708 = vmatmul.mubr.bf16.gmra.mrb[0].mxu0 %v538
        %v709 = vpop.f32.mrb[0].mxu0
        %v710 = vadd.f32 %v562, %v709
        %v711 = vpop.f32.mrb[0].mxu0
        %v712 = vpop.f32.mrb[0].mxu0
        %v713 = vadd.f32 %v562, %v712
        %v714 = vpop.f32.mrb[0].mxu0
        %715 = vmatprep.mubr.bf16.mxu0 0
        %716 = vmatmul.mubr.bf16.gmra.mrb[0].mxu0 %v539
        %v717 = vpop.f32.mrb[0].mxu0
        %v718 = vadd.f32 %v562, %v717
        %v719 = vpop.f32.mrb[0].mxu0
        %v720 = vpop.f32.mrb[0].mxu0
        %v721 = vadd.f32 %v562, %v720
        %v722 = vpop.f32.mrb[0].mxu0
        %723 = vmatprep.mubr.bf16.mxu0 0
        %724 = vmatmul.mubr.bf16.gmra.mrb[0].mxu0 %v540
        %v725 = vpop.f32.mrb[0].mxu0
        %v726 = vadd.f32 %v562, %v725
        %v727 = vpop.f32.mrb[0].mxu0
        %v728 = vpop.f32.mrb[0].mxu0
        %v729 = vadd.f32 %v562, %v728
        %v730 = vpop.f32.mrb[0].mxu0
        %731 = vmatprep.mubr.bf16.mxu0 0
        %732 = vmatmul.mubr.bf16.gmra.mrb[0].mxu0 %v541
        %v733 = vpop.f32.mrb[0].mxu0
        %v734 = vadd.f32 %v562, %v733
        %v735 = vpop.f32.mrb[0].mxu0
        %v736 = vpop.f32.mrb[0].mxu0
        %v737 = vadd.f32 %v562, %v736
        %v738 = vpop.f32.mrb[0].mxu0
        %739 = vdwg.mxu0
        %v740 = vadd.f32 %v248, %v646
        %v741 = vadd.f32 %v249, %v649
        %v742 = vadd.f32 %v250, %v654
        %v743 = vadd.f32 %v251, %v657
        %v744 = vadd.f32 %v252, %v662
        %v745 = vadd.f32 %v253, %v665
        %v746 = vadd.f32 %v254, %v670
        %v747 = vadd.f32 %v255, %v673
        %v748 = vadd.f32 %v256, %v678
        %v749 = vadd.f32 %v257, %v681
        %v750 = vadd.f32 %v258, %v686
        %v751 = vadd.f32 %v259, %v689
        %v752 = vadd.f32 %v260, %v694
        %v753 = vadd.f32 %v261, %v697
        %v754 = vadd.f32 %v262, %v702
        %v755 = vadd.f32 %v263, %v705
        %v756 = vadd.f32 %v264, %v710
        %v757 = vadd.f32 %v265, %v713
        %v758 = vadd.f32 %v266, %v718
        %v759 = vadd.f32 %v267, %v721
        %v760 = vadd.f32 %v268, %v726
        %v761 = vadd.f32 %v269, %v729
        %v762 = vadd.f32 %v270, %v734
        %v763 = vadd.f32 %v271, %v737
        %764 = vst [vmem:[%s244] sm:$0xff] %v740
        %765 = vst [vmem:[%s244 + $0x8] sm:$0xff] %v741
        %766 = vst [vmem:[%s244 + $0x10] sm:$0xff] %v742
        %767 = vst [vmem:[%s244 + $0x18] sm:$0xff] %v743
        %768 = vst [vmem:[%s244 + $0x20] sm:$0xff] %v744
        %769 = vst [vmem:[%s244 + $0x28] sm:$0xff] %v745
        %770 = vst [vmem:[%s244 + $0x30] sm:$0xff] %v746
        %771 = vst [vmem:[%s244 + $0x38] sm:$0xff] %v747
        %772 = vst [vmem:[%s244 + $0x40] sm:$0xff] %v748
        %773 = vst [vmem:[%s244 + $0x48] sm:$0xff] %v749
        %774 = vst [vmem:[%s244 + $0x50] sm:$0xff] %v750
        %775 = vst [vmem:[%s244 + $0x58] sm:$0xff] %v751
        %776 = vst [vmem:[%s244 + $0x60] sm:$0xff] %v752
        %777 = vst [vmem:[%s244 + $0x68] sm:$0xff] %v753
        %778 = vst [vmem:[%s244 + $0x70] sm:$0xff] %v754
        %779 = vst [vmem:[%s244 + $0x78] sm:$0xff] %v755
        %780 = vst [vmem:[%s244 + $0x80] sm:$0xff] %v756
        %781 = vst [vmem:[%s244 + $0x88] sm:$0xff] %v757
        %782 = vst [vmem:[%s244 + $0x90] sm:$0xff] %v758
        %783 = vst [vmem:[%s244 + $0x98] sm:$0xff] %v759
        %784 = vst [vmem:[%s244 + $0xa0] sm:$0xff] %v760
        %785 = vst [vmem:[%s244 + $0xa8] sm:$0xff] %v761
        %786 = vst [vmem:[%s244 + $0xb0] sm:$0xff] %v762
        %787 = vst [vmem:[%s244 + $0xb8] sm:$0xff] %v763
        %s788 = sand.u32 %s119, 1
        %s789 = scalar_lea.sflag [#allocation4], %s788
        %s790 = sand.u32 %s119, 1
        %s791 = smul.addr %s790, 192
        %s792 = scalar_lea.vmem [#allocation8], %s791
        // Predicated region
        $region49: #{tpu_custom_call.1} parent=35 // pred_check
          %p793 = pneg %p129
        $region50: #{tpu_custom_call.1} parent=35 // pred_check_branch
          %795 = sbr.rel (%p793) target = $region52
        $region51: #{tpu_custom_call.1} parent=35 // pred_region
          %s796 = smul.u32 24, %s22
          %s798 = ssub.s32 3072, 3072
          %799 = vsyncadd %s789, %s798
          %s800 = smul.addr %s796, 128
          %s801 = scalar_lea.hbm %s4, %s800
          %s802 = sshll.u32 %s792, 4
          %s803 = int_to_ptr.vmem [resolvable:$true] %s802
          %808 = dma.vmem_to_hbm [thread:$0]  %s803, 3072, %s801, %s789, 128, 128, 8
        $region52: #{tpu_custom_call.1} parent=35 // pred_fallthru
          _
      $region36: #{tpu_custom_call.1} parent=5 // pred_fallthru
        _
      %p809 = scmp.le.s32.totalorder 2, %s17
      // Predicated region
      $region53: #{tpu_custom_call.1} parent=5 // pred_check
        %p810 = pneg %p809
      $region54: #{tpu_custom_call.1} parent=5 // pred_check_branch
        %812 = sbr.rel (%p810) target = $region56
      $region55: #{tpu_custom_call.1} parent=5 // pred_region
        %s813 = ssub.s32 %s17, 2
        // Predicated region
        $region57: #{tpu_custom_call.1} parent=55 // pred_check
          %p814 = pneg %p135
        $region58: #{tpu_custom_call.1} parent=55 // pred_check_branch
          %816 = sbr.rel (%p814) target = $region60
        $region59: #{tpu_custom_call.1} parent=55 // pred_region
          %s817 = sand.u32 %s120, 1
          %s818 = scalar_lea.sflag [#allocation4], %s817
          %s819 = sand.u32 %s120, 1
          %s820 = smul.addr %s819, 192
          %s821 = scalar_lea.vmem [#allocation8], %s820
          %822 = dma.done %s818, 3072
        $region60: #{tpu_custom_call.1} parent=55 // pred_fallthru
          _
      $region56: #{tpu_custom_call.1} parent=5 // pred_fallthru
        _
    $region6: #{tpu_custom_call.1} parent=1 // loop_footer
      %s21 = sadd.s32 1, %s17
    $region7: #{tpu_custom_call.1} parent=1 // loop_footer_branch
      %16 = sbr.rel target = $region3
    $region8: #{tpu_custom_call.1} parent=1 // loop_exit
      _
    %823 = vsyncpa [#allocation3], 1
    %s824 = scalar_lea.sflag [#allocation3], 1
    %825 = vsyncpa %s824, 1
    %826 = vsyncpa [#allocation6], 1
    %827 = vsyncpa [#allocation4], 1
    %s828 = scalar_lea.sflag [#allocation4], 1
    %829 = vsyncpa %s828, 1

</llo_original>
